<compile_context>
chip_gen: v7x
topology: tpu7x:2x2x1
jax: 0.10.0
libtpu: 0.0.40
codegen_flags: <defaults>
</compile_context>

<pallas_src>
import functools

import jax
import jax.numpy as jnp
from jax import lax
from jax.experimental import pallas as pl
from jax.experimental.pallas import tpu as pltpu


def _round_up(v: int, m: int) -> int:
    return (v + m - 1) // m * m


def _cdiv(a: int, b: int) -> int:
    return (a + b - 1) // b


def _vmem_capacity_bytes() -> int:
    try:
        return int(pltpu.get_tpu_info().vmem_capacity_bytes)
    except Exception:
        return 64 * 1024 * 1024          # conservative (v7x per-core) fallback


def _num_node_splits() -> int:
    """Leading 'parallel' grid extent: 2 on multi-TensorCore chips, else 1."""
    try:
        kind = jax.devices()[0].device_kind.lower()
    except Exception:
        return 1
    if "v7" in kind or "v4" in kind or "v5p" in kind:
        return 2
    return 1


def _hidden_sum_kernel(x_ref, w1_ref, b1_ref, o_ref, *,
                       n_nodes: int, tile_n: int, tiles_per_split: int,
                       needs_mask: bool, compute_dtype):
    """One grid step: linear1 + ReLU on one node tile, accumulate the row-sum
    of the hidden activations directly into the (resident) output block."""
    c = pl.program_id(0)            # node-split axis ("parallel", per TensorCore)
    t = pl.program_id(1)            # node-tile axis ("arbitrary" reduction)

    @pl.when(t == 0)
    def _init():
        o_ref[...] = jnp.zeros_like(o_ref)

    # In-kernel cast (VPU, hidden under the x DMA) -> bf16 MXU, f32 accumulate.
    x = x_ref[...].astype(compute_dtype)
    h = jnp.dot(x, w1_ref[...], preferred_element_type=jnp.float32)
    h = jnp.maximum(h + b1_ref[...], 0.0)               # (tile_n, hidden), f32
    # TODO(synk): Dropout(p=0.2) is identity in eval mode; training-mode RNG
    # dropout is intentionally not implemented.

    if needs_mask:  # static: zero padded / out-of-range node rows exactly
        row0 = (c * tiles_per_split + t) * tile_n
        rid = row0 + lax.broadcasted_iota(jnp.int32, (tile_n, 1), 0)
        h = jnp.where(rid < n_nodes, h, 0.0)

    # vreg-aligned partial row-sum: (tile_n, H) -> (tile_n//8, 8, H) -> (8, H).
    # Pure VPU vreg adds; no per-step cross-sublane (XLU) reduction.
    o_ref[...] += jnp.sum(h.reshape(tile_n // 8, 8, h.shape[-1]), axis=0)


def qa_graph_encoder_forward(x, w1, b1, w2, b2, *, compute_dtype=jnp.bfloat16,
                             tile_n=None, num_splits=None):
    """x: [N, input_dim] float32.  w1: [in, hid], b1: [hid], w2: [hid, out],
    b2: [out].  Returns the [output_dim] float32 graph embedding (eval mode)."""
    n, d_in = x.shape
    hidden = w1.shape[1]
    d_out = w2.shape[1]

    if n == 0:
        # Matches the module's empty-graph branch: torch.zeros(output_dim).
        return jnp.zeros((d_out,), jnp.float32)

    compute_dtype = jnp.dtype(compute_dtype)
    c_item = compute_dtype.itemsize

    # --- node-tile sizing (generation aware, VMEM budgeted) -------------------
    vmem_cap = _vmem_capacity_bytes()
    # per-node-row VMEM: double-buffered f32 x block + in-kernel cast copy +
    # f32 hidden activations (with slack for the masked copy).
    per_row = 2 * d_in * 4 + d_in * c_item + 2 * hidden * 4
    if tile_n is None:
        budget = int(vmem_cap * 0.45)
        tile_n = (budget // per_row) // 128 * 128
    tile_n = max(128, min(8192, _round_up(int(tile_n), 128)))
    tile_n = min(tile_n, _round_up(n, 128))     # don't overshoot small graphs

    num_tiles = _cdiv(n, tile_n)
    if num_splits is None:
        num_splits = _num_node_splits()
    num_splits = max(1, min(int(num_splits), num_tiles))
    tiles_per_split = _cdiv(num_tiles, num_splits)
    needs_mask = (num_splits * tiles_per_split * tile_n != n)

    # Weight prep is tiny now (single bf16 cast of W1 + a reshape of b1);
    # W2 / b2 stay in the wrapper finalize.
    # TODO(synk): for repeated calls, jit the whole wrapper so this cast is cached.
    w1_c = w1.astype(compute_dtype)
    b1_r = jnp.reshape(b1, (1, hidden)).astype(jnp.float32)

    last_tile = num_tiles - 1

    def x_index_map(c, t):
        # Clamp so ragged splits never request a fully out-of-range block; the
        # in-kernel row mask zeroes any duplicated / padded rows exactly.
        return (jnp.minimum(c * tiles_per_split + t, last_tile), 0)

    kernel = functools.partial(
        _hidden_sum_kernel, n_nodes=n, tile_n=tile_n,
        tiles_per_split=tiles_per_split, needs_mask=needs_mask,
        compute_dtype=compute_dtype)

    vmem_need = (2 * tile_n * d_in * 4           # x blocks (double-buffered, f32)
                 + tile_n * d_in * c_item        # in-kernel cast copy
                 + 2 * tile_n * hidden * 4       # h (+ masked copy)
                 + 2 * d_in * hidden * c_item    # W1 blocks
                 + 4 * hidden * 16 * 4)          # b1 / output blocks, slack
    vmem_limit = int(min(vmem_cap, max(32 << 20, vmem_need + (8 << 20))))

    hidden_sums = pl.pallas_call(
        kernel,
        out_shape=jax.ShapeDtypeStruct((num_splits * 8, hidden), jnp.float32),
        grid_spec=pltpu.PrefetchScalarGridSpec(
            num_scalar_prefetch=0,
            grid=(num_splits, tiles_per_split),
            in_specs=[
                pl.BlockSpec((tile_n, d_in), x_index_map),          # x node tile
                pl.BlockSpec((d_in, hidden), lambda c, t: (0, 0)),  # W1 (resident)
                pl.BlockSpec((1, hidden), lambda c, t: (0, 0)),     # b1
            ],
            out_specs=pl.BlockSpec((8, hidden), lambda c, t: (c, 0)),
        ),
        compiler_params=pltpu.CompilerParams(
            dimension_semantics=("parallel", "arbitrary"),
            vmem_limit_bytes=vmem_limit),
    )(x, w1_c, b1_r)

    # Finalize (tiny, runs once, plain JAX): mean over nodes, linear2 + bias.
    mean_h = jnp.sum(hidden_sums, axis=0) * (1.0 / n)               # (hidden,)
    y = mean_h @ w2.astype(jnp.float32) + b2.astype(jnp.float32)    # (d_out,)
    return y.astype(jnp.float32)


def _init_params(key, input_dim, hidden_dim, output_dim):
    """Deterministic PyTorch-nn.Linear-style init (uniform +-1/sqrt(fan_in))."""
    k1, k2, k3, k4 = jax.random.split(key, 4)
    lim1 = 1.0 / float(input_dim) ** 0.5
    lim2 = 1.0 / float(hidden_dim) ** 0.5
    w1 = jax.random.uniform(k1, (input_dim, hidden_dim), jnp.float32, -lim1, lim1)
    b1 = jax.random.uniform(k2, (hidden_dim,), jnp.float32, -lim1, lim1)
    w2 = jax.random.uniform(k3, (hidden_dim, output_dim), jnp.float32, -lim2, lim2)
    b2 = jax.random.uniform(k4, (output_dim,), jnp.float32, -lim2, lim2)
    return w1, b1, w2, b2


if __name__ == "__main__":
    # Small shapes consistent with the module (N node features -> MLP -> mean pool).
    INPUT_DIM, HIDDEN_DIM, OUTPUT_DIM = 128, 64, 32

    key = jax.random.PRNGKey(0)
    kx1, kx2, kp = jax.random.split(key, 3)
    w1, b1, w2, b2 = _init_params(kp, INPUT_DIM, HIDDEN_DIM, OUTPUT_DIM)

    def reference(x):
        # Pure-JAX reference (eval-mode dropout == identity).
        h = jnp.maximum(x @ w1 + b1, 0.0)
        return jnp.mean(h @ w2 + b2, axis=0)

    # Path 1: tiny ragged graph -> single tile with masked pad rows.
    x_small = jax.random.normal(kx1, (37, INPUT_DIM), jnp.float32)
    out_small = jax.block_until_ready(
        qa_graph_encoder_forward(x_small, w1, b1, w2, b2))
    assert out_small.shape == (OUTPUT_DIM,)
    assert jnp.allclose(out_small, reference(x_small), atol=2e-2, rtol=2e-2)

    # Same graph with f32 MXU inputs (tight-tolerance numerics sanity check).
    out_small_f32 = jax.block_until_ready(
        qa_graph_encoder_forward(x_small, w1, b1, w2, b2,
                                 compute_dtype=jnp.float32))
    assert jnp.allclose(out_small_f32, reference(x_small), atol=1e-4, rtol=1e-4)

    # Path 2: larger graph -> multi-tile reduction grid with a ragged last tile
    # (tile_n forced small so the grid has several steps even at test size).
    x_big = jax.random.normal(kx2, (1000, INPUT_DIM), jnp.float32)
    out_big = jax.block_until_ready(
        qa_graph_encoder_forward(x_big, w1, b1, w2, b2, tile_n=256))
    assert out_big.shape == (OUTPUT_DIM,)
    assert jnp.allclose(out_big, reference(x_big), atol=2e-2, rtol=2e-2)

    # Forced 2-way node split: exercises the multi-TensorCore grid path (runs
    # sequentially and produces identical results on 1-TC chips).
    out_split = jax.block_until_ready(
        qa_graph_encoder_forward(x_big, w1, b1, w2, b2, tile_n=256,
                                 num_splits=2))
    assert jnp.allclose(out_split, reference(x_big), atol=2e-2, rtol=2e-2)

    # Empty-graph branch: matches torch.zeros(output_dim).
    out_empty = qa_graph_encoder_forward(
        jnp.zeros((0, INPUT_DIM), jnp.float32), w1, b1, w2, b2)
    assert out_empty.shape == (OUTPUT_DIM,) and bool(jnp.all(out_empty == 0.0))

    print("KERNEL_OK")
</pallas_src>

<mosaic_0001>
module attributes {stable_mosaic.version = 11 : i64} {
  func.func @_hidden_sum_kernel(%arg0: i32, %arg1: i32, %arg2: memref<128x128xf32, #tpu.memory_space<vmem>>, %arg3: memref<128x64xbf16, #tpu.memory_space<vmem>>, %arg4: memref<1x64xf32, #tpu.memory_space<vmem>>, %arg5: memref<8x64xf32, #tpu.memory_space<vmem>>) attributes {dimension_semantics = [#tpu.dimension_semantics<parallel>, #tpu.dimension_semantics<arbitrary>], iteration_bounds = array<i64: 1, 1>, scalar_prefetch = 0 : i64, scratch_operands = 0 : i64, tpu.core_type = #tpu.core_type<tc>, window_params = [{transform_indices = @transform_0, window_bounds = array<i64: 128, 128>}, {pipeline_mode = #tpu.pipeline_mode<synchronous>, transform_indices = @transform_1, window_bounds = array<i64: 128, 64>}, {pipeline_mode = #tpu.pipeline_mode<synchronous>, transform_indices = @transform_2, window_bounds = array<i64: 1, 64>}, {transform_indices = @transform_3, window_bounds = array<i64: 8, 64>}]} {
    %c0_i32 = arith.constant 0 : i32
    %0 = arith.cmpi eq, %arg1, %c0_i32 : i32
    %1 = arith.extui %0 : i1 to i32
    %c0_i32_0 = arith.constant 0 : i32
    %2 = arith.cmpi ne, %1, %c0_i32_0 : i32
    scf.if %2 {
      %cst_13 = arith.constant 0.000000e+00 : f32
      %29 = vector.broadcast %cst_13 : f32 to vector<8x64xf32>
      %c0_14 = arith.constant 0 : index
      %c0_15 = arith.constant 0 : index
      %30 = vector.load %arg5[%c0_14, %c0_15] : memref<8x64xf32, #tpu.memory_space<vmem>>, vector<8x64xf32>
      tpu.vector_store %arg5[%c0_14, %c0_15], %29 {strides = array<i32>} : memref<8x64xf32, #tpu.memory_space<vmem>>, vector<8x64xf32>,
    } else {
    }
    %c0 = arith.constant 0 : index
    %c0_1 = arith.constant 0 : index
    %3 = vector.load %arg2[%c0, %c0_1] : memref<128x128xf32, #tpu.memory_space<vmem>>, vector<128x128xf32>
    %4 = arith.truncf %3 : vector<128x128xf32> to vector<128x128xbf16>
    %c0_2 = arith.constant 0 : index
    %c0_3 = arith.constant 0 : index
    %5 = vector.load %arg3[%c0_2, %c0_3] : memref<128x64xbf16, #tpu.memory_space<vmem>>, vector<128x64xbf16>
    %cst = arith.constant dense<0.000000e+00> : vector<128x64xf32>
    %6 = tpu.matmul %4, %5, %cst {dimension_numbers = #tpu.dot_dimension_numbers<[1], [0], [0], [1], [0, 0, 1, 1], [], []>} : vector<128x128xbf16>, vector<128x64xbf16>, vector<128x64xf32> -> vector<128x64xf32>
    %c0_4 = arith.constant 0 : index
    %c0_5 = arith.constant 0 : index
    %7 = vector.load %arg4[%c0_4, %c0_5] : memref<1x64xf32, #tpu.memory_space<vmem>>, vector<1x64xf32>
    %8 = vector.broadcast %7 : vector<1x64xf32> to vector<128x64xf32>
    %9 = arith.addf %6, %8 : vector<128x64xf32>
    %cst_6 = arith.constant 0.000000e+00 : f32
    %10 = vector.broadcast %cst_6 : f32 to vector<128x64xf32>
    %11 = arith.maximumf %9, %10 : vector<128x64xf32>
    %c1_i32 = arith.constant 1 : i32
    %12 = arith.muli %arg0, %c1_i32 : i32
    %13 = arith.addi %12, %arg1 : i32
    %c128_i32 = arith.constant 128 : i32
    %14 = arith.muli %13, %c128_i32 : i32
    %15 = tpu.iota {dimensions = array<i32: 0>} : vector<128x1xi32>
    %16 = vector.broadcast %14 : i32 to vector<128x1xi32>
    %17 = arith.addi %16, %15 : vector<128x1xi32>
    %c37_i32 = arith.constant 37 : i32
    %18 = vector.broadcast %c37_i32 : i32 to vector<128x1xi32>
    %19 = arith.cmpi slt, %17, %18 : vector<128x1xi32>
    %cst_7 = arith.constant 0.000000e+00 : f32
    %20 = vector.shape_cast %19 : vector<128x1xi1> to vector<128x1xi1>
    %21 = vector.broadcast %20 : vector<128x1xi1> to vector<128x64xi1>
    %22 = vector.broadcast %cst_7 : f32 to vector<128x64xf32>
    %23 = arith.select %21, %11, %22 : vector<128x64xi1>, vector<128x64xf32>
    %c0_8 = arith.constant 0 : index
    %c0_9 = arith.constant 0 : index
    %24 = vector.load %arg5[%c0_8, %c0_9] : memref<8x64xf32, #tpu.memory_space<vmem>>, vector<8x64xf32>
    %25 = vector.shape_cast %23 : vector<128x64xf32> to vector<16x8x64xf32>
    %cst_10 = arith.constant dense<0.000000e+00> : vector<8x64xf32>
    %26 = vector.multi_reduction <add>, %25, %cst_10 [0] : vector<16x8x64xf32> to vector<8x64xf32>
    %27 = arith.addf %24, %26 : vector<8x64xf32>
    %c0_11 = arith.constant 0 : index
    %c0_12 = arith.constant 0 : index
    %28 = vector.load %arg5[%c0_11, %c0_12] : memref<8x64xf32, #tpu.memory_space<vmem>>, vector<8x64xf32>
    tpu.vector_store %arg5[%c0_11, %c0_12], %27 {strides = array<i32>} : memref<8x64xf32, #tpu.memory_space<vmem>>, vector<8x64xf32>,
    return
  }
  func.func @transform_0(%arg0: i32, %arg1: i32) -> (i32, i32) {
    %c1_i32 = arith.constant 1 : i32
    %0 = arith.muli %arg0, %c1_i32 : i32
    %1 = arith.addi %0, %arg1 : i32
    %c0_i32 = arith.constant 0 : i32
    %2 = arith.minsi %1, %c0_i32 : i32
    %c0_i32_0 = arith.constant 0 : i32
    %c0_i32_1 = arith.constant 0 : i32
    return %2, %c0_i32_0 : i32, i32
  }
  func.func @transform_1(%arg0: i32, %arg1: i32) -> (i32, i32) {
    %c0_i32 = arith.constant 0 : i32
    %c0_i32_0 = arith.constant 0 : i32
    %c0_i32_1 = arith.constant 0 : i32
    return %c0_i32, %c0_i32_0 : i32, i32
  }
  func.func @transform_2(%arg0: i32, %arg1: i32) -> (i32, i32) {
    %c0_i32 = arith.constant 0 : i32
    %c0_i32_0 = arith.constant 0 : i32
    %c0_i32_1 = arith.constant 0 : i32
    return %c0_i32, %c0_i32_0 : i32, i32
  }
  func.func @transform_3(%arg0: i32, %arg1: i32) -> (i32, i32) {
    %c0_i32 = arith.constant 0 : i32
    %c0_i32_0 = arith.constant 0 : i32
    return %arg0, %c0_i32 : i32, i32
  }
}

</mosaic_0001>

<llo_original>
// kernel: tpu_custom_call.1
$region0: #{tpu_custom_call.1}
  #allocation0 [shape = 'u32[]', space=smem, size = 0x4, offset = 0x4, fixed_abs, tag = 'smem constant byte address 0x4 - core index']
  #allocation1 [shape = 'u32[144,128]{1,0:T(1,128)}', space=vmem, size = 0x12000, scoped, tag = 'internal scratch']
  %s0 = inlined_call_operand.vmem [shape: f32[37,128], index: 0, kind: input, shape index: {}]
  %s1 = inlined_call_operand.vmem [shape: bf16[128,64], index: 1, kind: input, shape index: {}]
  %s2 = inlined_call_operand.vmem [shape: f32[1,64], index: 2, kind: input, shape index: {}]
  %s3 = inlined_call_operand.hbm [shape: f32[8,64], index: 3, kind: output, shape index: {}]
  %s4 = sld [smem:[#allocation0]]
  $region26: #{tpu_custom_call.1} parent=0
    _
  %s6 = ssub.s32 1, %s4
  %s7 = scalar_select 0, %s6, %s4
  $region1: #{tpu_custom_call.1} parent=0
    #allocation2 [shape = 'u8[4096]{0}', space=vmem, size = 0x1000, scoped, tag = 'output window, operand 0, single buffered']
    #allocation3 [shape = 's32[1]{0}', space=sflag, size = 0x4, scoped, tag = 'scoped memory for tpu_custom_call.1']
    %8 = vsyncpa [#allocation3], 0
    // Predicated region
    $region2: #{tpu_custom_call.1} parent=1 // pred_check
      _
    $region3: #{tpu_custom_call.1} parent=1 // pred_check_branch
      %10 = sbr.rel (0) target = $region5
    $region4: #{tpu_custom_call.1} parent=1 // pred_region
      %s11 = sadd.s32 0, 0
      %p12 = scmp.lt.s32.totalorder %s11, 0
      %s13 = scalar_select %p12, %s11, 0
      %s14 = smul.u32 16, %s13
      %s15 = ssub.s32 5, %s14
      %s16 = smul.u32 128, %s15
      %p17 = scmp.lt.s32.totalorder %s14, 4
      %s18 = scalar_select %p17, %s14, 4
      %s19 = smul.addr %s18, 8
      %s20 = scalar_lea.vmem %s0, %s19
      %s21 = sadd.s32 0, 0
      %p22 = scmp.lt.s32.totalorder %s21, 0
      %s23 = scalar_select %p22, %s21, 0
      %s24 = smul.u32 16, %s23
      %s25 = ssub.s32 5, %s24
      %s26 = smul.u32 128, %s25
    $region5: #{tpu_custom_call.1} parent=1 // pred_fallthru
      _
    // Predicated region
    $region6: #{tpu_custom_call.1} parent=1 // pred_check
      _
    $region7: #{tpu_custom_call.1} parent=1 // pred_check_branch
      %28 = sbr.rel (0) target = $region9
    $region8: #{tpu_custom_call.1} parent=1 // pred_region
      _
    $region9: #{tpu_custom_call.1} parent=1 // pred_fallthru
      _
    // Predicated region
    $region10: #{tpu_custom_call.1} parent=1 // pred_check
      _
    $region11: #{tpu_custom_call.1} parent=1 // pred_check_branch
      %30 = sbr.rel (0) target = $region13
    $region12: #{tpu_custom_call.1} parent=1 // pred_region
      _
    $region13: #{tpu_custom_call.1} parent=1 // pred_fallthru
      _
    %s31 = sadd.s32 0, 0
    %p32 = scmp.lt.s32.totalorder %s31, 0
    %s33 = scalar_select %p32, %s31, 0
    %s34 = smul.u32 16, %s33
    %s35 = ssub.s32 5, %s34
    %s36 = smul.u32 128, %s35
    %p37 = scmp.lt.s32.totalorder %s34, 4
    %s38 = scalar_select %p37, %s34, 4
    %s39 = smul.addr %s38, 8
    %s40 = scalar_lea.vmem %s0, %s39
    %s41 = sadd.s32 0, 0
    %p42 = scmp.lt.s32.totalorder %s41, 0
    %s43 = scalar_select %p42, %s41, 0
    %s44 = smul.u32 16, %s43
    %s45 = ssub.s32 5, %s44
    %s46 = smul.u32 128, %s45
    %p47 = scmp.lt.s32.totalorder %s44, 4
    %s48 = scalar_select %p47, %s44, 4
    %s49 = smul.addr %s48, 8
    %s50 = scalar_lea.vmem %s0, %s49
    %s51 = sadd.s32 0, 0
    %p52 = scmp.lt.s32.totalorder %s51, 0
    %s53 = scalar_select %p52, %s51, 0
    %s54 = smul.u32 16, %s53
    %s55 = ssub.s32 5, %s54
    %s56 = smul.u32 128, %s55
    %p58 = scmp.eq.s32.totalorder 0, 0
    // Predicated region
    $region14: #{tpu_custom_call.1} parent=1 // pred_check
      %p59 = pneg %p58
    $region15: #{tpu_custom_call.1} parent=1 // pred_check_branch
      %61 = sbr.rel (%p59) target = $region17
    $region16: #{tpu_custom_call.1} parent=1 // pred_region
      %vm62 = vcmask 523264
      %63 = vst.msk [vmem:[#allocation2] sm:$0xff] %vm62, 0.0
    $region17: #{tpu_custom_call.1} parent=1 // pred_fallthru
      _
    %v64 = vld [vmem:[%s50] sm:$0xff]
    %v65 = vld [vmem:[%s50 + $0x8] sm:$0xff]
    %v66 = vld [vmem:[%s50 + $0x10] sm:$0xff]
    %v67 = vld [vmem:[%s50 + $0x18] sm:$0xff]
    %v68 = vld [vmem:[%s50 + $0x20] sm:$0xff]
    %v69 = vld [vmem:[%s50 + $0x28] sm:$0xff]
    %v70 = vld [vmem:[%s50 + $0x30] sm:$0xff]
    %v71 = vld [vmem:[%s50 + $0x38] sm:$0xff]
    %v72 = vld [vmem:[%s50 + $0x40] sm:$0xff]
    %v73 = vld [vmem:[%s50 + $0x48] sm:$0xff]
    %v74 = vld [vmem:[%s50 + $0x50] sm:$0xff]
    %v75 = vld [vmem:[%s50 + $0x58] sm:$0xff]
    %v76 = vld [vmem:[%s50 + $0x60] sm:$0xff]
    %v77 = vld [vmem:[%s50 + $0x68] sm:$0xff]
    %v78 = vld [vmem:[%s50 + $0x70] sm:$0xff]
    %v79 = vld [vmem:[%s50 + $0x78] sm:$0xff]
    %v80 = vpack.c.bf16 %v65, %v64
    %v81 = vpack.c.bf16 %v67, %v66
    %v82 = vpack.c.bf16 %v69, %v68
    %v83 = vpack.c.bf16 %v71, %v70
    %v84 = vpack.c.bf16 %v73, %v72
    %v85 = vpack.c.bf16 %v75, %v74
    %v86 = vpack.c.bf16 %v77, %v76
    %v87 = vpack.c.bf16 %v79, %v78
    %v88 = vld [vmem:[%s1] sm:$0xf]
    %v89 = vld [vmem:[%s1 + $0x4] sm:$0xf]
    %v90 = vld [vmem:[%s1 + $0x8] sm:$0xf]
    %v91 = vld [vmem:[%s1 + $0xc] sm:$0xf]
    %v92 = vld [vmem:[%s1 + $0x10] sm:$0xf]
    %v93 = vld [vmem:[%s1 + $0x14] sm:$0xf]
    %v94 = vld [vmem:[%s1 + $0x18] sm:$0xf]
    %v95 = vld [vmem:[%s1 + $0x1c] sm:$0xf]
    %v96 = vld [vmem:[%s1 + $0x20] sm:$0xf]
    %v97 = vld [vmem:[%s1 + $0x24] sm:$0xf]
    %v98 = vld [vmem:[%s1 + $0x28] sm:$0xf]
    %v99 = vld [vmem:[%s1 + $0x2c] sm:$0xf]
    %v100 = vld [vmem:[%s1 + $0x30] sm:$0xf]
    %v101 = vld [vmem:[%s1 + $0x34] sm:$0xf]
    %v102 = vld [vmem:[%s1 + $0x38] sm:$0xf]
    %v103 = vld [vmem:[%s1 + $0x3c] sm:$0xf]
    %v104 = vld [vmem:[%s2] sm:$0x1]
    %v106 = vlaneseq
    %v107 = vshrl.u32 %v106, 7
    %v108 = vsub.s32 0, %v107
    %v109 = vrot.slane %v104, %v108
    %v127 = vunpack.c.l.b16 %v88
    %v128 = vunpack.c.l.b16 %v89
    %v129 = vunpack.c.l.b16 %v90
    %v130 = vunpack.c.l.b16 %v91
    %v131 = vunpack.c.l.b16 %v92
    %v132 = vunpack.c.l.b16 %v93
    %v133 = vunpack.c.l.b16 %v94
    %v134 = vunpack.c.l.b16 %v95
    %v135 = vunpack.c.l.b16 %v96
    %v136 = vunpack.c.l.b16 %v97
    %v137 = vunpack.c.l.b16 %v98
    %v138 = vunpack.c.l.b16 %v99
    %v139 = vunpack.c.l.b16 %v100
    %v140 = vunpack.c.l.b16 %v101
    %v141 = vunpack.c.l.b16 %v102
    %v142 = vunpack.c.l.b16 %v103
    %v143 = vpack.c.b16 %v128, %v127
    %v144 = vpack.c.b16 %v130, %v129
    %v145 = vpack.c.b16 %v132, %v131
    %v146 = vpack.c.b16 %v134, %v133
    %v147 = vpack.c.b16 %v136, %v135
    %v148 = vpack.c.b16 %v138, %v137
    %v149 = vpack.c.b16 %v140, %v139
    %v150 = vpack.c.b16 %v142, %v141
    %159 = vmatprep.subr.bf16.mxu0 0
    %160 = vmatpush1.bf16.msra.mxu0 %v143
    %161 = vmatprep.subr.bf16.mxu0 0
    %162 = vmatpush1.bf16.msra.mxu0 %v144
    %163 = vmatprep.subr.bf16.mxu0 0
    %164 = vmatpush1.bf16.msra.mxu0 %v145
    %165 = vmatprep.subr.bf16.mxu0 0
    %166 = vmatpush1.bf16.msra.mxu0 %v146
    %167 = vmatprep.subr.bf16.mxu0 0
    %168 = vmatpush1.bf16.msra.mxu0 %v147
    %169 = vmatprep.subr.bf16.mxu0 0
    %170 = vmatpush1.bf16.msra.mxu0 %v148
    %171 = vmatprep.subr.bf16.mxu0 0
    %172 = vmatpush1.bf16.msra.mxu0 %v149
    %173 = vmatprep.subr.bf16.mxu0 0
    %174 = vmatpush1.bf16.msra.mxu0 %v150
    %175 = vmatprep.subr.bf16.mxu0 0
    %176 = vmatpush1.bf16.msra.mxu0 0
    %177 = vmatprep.subr.bf16.mxu0 0
    %178 = vmatpush1.bf16.msra.mxu0 0
    %179 = vmatprep.subr.bf16.mxu0 0
    %180 = vmatpush1.bf16.msra.mxu0 0
    %181 = vmatprep.subr.bf16.mxu0 0
    %182 = vmatpush1.bf16.msra.mxu0 0
    %183 = vmatprep.subr.bf16.mxu0 0
    %184 = vmatpush1.bf16.msra.mxu0 0
    %185 = vmatprep.subr.bf16.mxu0 0
    %186 = vmatpush1.bf16.msra.mxu0 0
    %187 = vmatprep.subr.bf16.mxu0 0
    %188 = vmatpush1.bf16.msra.mxu0 0
    %189 = vmatprep.subr.bf16.mxu0 0
    %190 = vmatpush1.bf16.msra.mxu0 0
    %191 = vmatprep.mubr.bf16.mxu0 0
    %192 = vmatmul.mubr.bf16.gmra.mrb[0].mxu0 %v80
    %v193 = vpop.f32.mrb[0].mxu0
    %v194 = vadd.f32 %v109, %v193
    %v195 = vpop.f32.mrb[0].mxu0
    %v196 = vpop.f32.mrb[0].mxu0
    %v197 = vadd.f32 %v109, %v196
    %v198 = vpop.f32.mrb[0].mxu0
    %199 = vmatprep.mubr.bf16.mxu0 0
    %200 = vmatmul.mubr.bf16.gmra.mrb[0].mxu0 %v81
    %v201 = vpop.f32.mrb[0].mxu0
    %v202 = vadd.f32 %v109, %v201
    %v203 = vpop.f32.mrb[0].mxu0
    %v204 = vpop.f32.mrb[0].mxu0
    %v205 = vadd.f32 %v109, %v204
    %v206 = vpop.f32.mrb[0].mxu0
    %207 = vmatprep.mubr.bf16.mxu0 0
    %208 = vmatmul.mubr.bf16.gmra.mrb[0].mxu0 %v82
    %v209 = vpop.f32.mrb[0].mxu0
    %v210 = vadd.f32 %v109, %v209
    %v211 = vpop.f32.mrb[0].mxu0
    %v212 = vpop.f32.mrb[0].mxu0
    %v213 = vadd.f32 %v109, %v212
    %v214 = vpop.f32.mrb[0].mxu0
    %215 = vmatprep.mubr.bf16.mxu0 0
    %216 = vmatmul.mubr.bf16.gmra.mrb[0].mxu0 %v83
    %v217 = vpop.f32.mrb[0].mxu0
    %v218 = vadd.f32 %v109, %v217
    %v219 = vpop.f32.mrb[0].mxu0
    %v220 = vpop.f32.mrb[0].mxu0
    %v221 = vadd.f32 %v109, %v220
    %v222 = vpop.f32.mrb[0].mxu0
    %223 = vmatprep.mubr.bf16.mxu0 0
    %224 = vmatmul.mubr.bf16.gmra.mrb[0].mxu0 %v84
    %v225 = vpop.f32.mrb[0].mxu0
    %v226 = vadd.f32 %v109, %v225
    %v227 = vpop.f32.mrb[0].mxu0
    %v228 = vpop.f32.mrb[0].mxu0
    %v229 = vadd.f32 %v109, %v228
    %v230 = vpop.f32.mrb[0].mxu0
    %231 = vmatprep.mubr.bf16.mxu0 0
    %232 = vmatmul.mubr.bf16.gmra.mrb[0].mxu0 %v85
    %v233 = vpop.f32.mrb[0].mxu0
    %v234 = vadd.f32 %v109, %v233
    %v235 = vpop.f32.mrb[0].mxu0
    %v236 = vpop.f32.mrb[0].mxu0
    %v237 = vadd.f32 %v109, %v236
    %v238 = vpop.f32.mrb[0].mxu0
    %239 = vmatprep.mubr.bf16.mxu0 0
    %240 = vmatmul.mubr.bf16.gmra.mrb[0].mxu0 %v86
    %v241 = vpop.f32.mrb[0].mxu0
    %v242 = vadd.f32 %v109, %v241
    %v243 = vpop.f32.mrb[0].mxu0
    %v244 = vpop.f32.mrb[0].mxu0
    %v245 = vadd.f32 %v109, %v244
    %v246 = vpop.f32.mrb[0].mxu0
    %247 = vmatprep.mubr.bf16.mxu0 0
    %248 = vmatmul.mubr.bf16.gmra.mrb[0].mxu0 %v87
    %v249 = vpop.f32.mrb[0].mxu0
    %v250 = vadd.f32 %v109, %v249
    %v251 = vpop.f32.mrb[0].mxu0
    %v252 = vpop.f32.mrb[0].mxu0
    %v253 = vadd.f32 %v109, %v252
    %v254 = vpop.f32.mrb[0].mxu0
    %255 = vdwg.mxu0
    %v256 = vmax.f32 %v194, 0.0
    %v257 = vmax.f32 %v197, 0.0
    %v258 = vmax.f32 %v202, 0.0
    %v259 = vmax.f32 %v205, 0.0
    %v260 = vmax.f32 %v210, 0.0
    %v261 = vmax.f32 %v213, 0.0
    %v262 = vmax.f32 %v218, 0.0
    %v263 = vmax.f32 %v221, 0.0
    %v264 = vmax.f32 %v226, 0.0
    %v265 = vmax.f32 %v229, 0.0
    %v266 = vmax.f32 %v234, 0.0
    %v267 = vmax.f32 %v237, 0.0
    %v268 = vmax.f32 %v242, 0.0
    %v269 = vmax.f32 %v245, 0.0
    %v270 = vmax.f32 %v250, 0.0
    %v271 = vmax.f32 %v253, 0.0
    %s272 = sadd.s32 0, 0
    %s273 = smul.u32 %s272, 128
    %v274 = vlaneseq
    %v275 = vshrl.u32 %v274, 7
    %v276 = vadd.s32 %v275, 8
    %v277 = vadd.s32 %v275, 16
    %v278 = vadd.s32 %v275, 24
    %v279 = vadd.s32 %v275, 32
    %v280 = vadd.s32 %v275, 40
    %v281 = vadd.s32 %v275, 48
    %v282 = vadd.s32 %v275, 56
    %v283 = vadd.s32 %v275, 64
    %v284 = vadd.s32 %v275, 72
    %v285 = vadd.s32 %v275, 80
    %v286 = vadd.s32 %v275, 88
    %v287 = vadd.s32 %v275, 96
    %v288 = vadd.s32 %v275, 104
    %v289 = vadd.s32 %v275, 112
    %v290 = vadd.s32 %v275, 120
    %v291 = vstv %s273
    %v292 = vadd.s32 %v291, %v275
    %v293 = vadd.s32 %v291, %v276
    %v294 = vadd.s32 %v291, %v277
    %v295 = vadd.s32 %v291, %v278
    %v296 = vadd.s32 %v291, %v279
    %v297 = vadd.s32 %v291, %v280
    %v298 = vadd.s32 %v291, %v281
    %v299 = vadd.s32 %v291, %v282
    %v300 = vadd.s32 %v291, %v283
    %v301 = vadd.s32 %v291, %v284
    %v302 = vadd.s32 %v291, %v285
    %v303 = vadd.s32 %v291, %v286
    %v304 = vadd.s32 %v291, %v287
    %v305 = vadd.s32 %v291, %v288
    %v306 = vadd.s32 %v291, %v289
    %v307 = vadd.s32 %v291, %v290
    %vm308 = vcmp.lt.s32.totalorder %v292, 37
    %vm309 = vcmp.lt.s32.totalorder %v293, 37
    %vm310 = vcmp.lt.s32.totalorder %v294, 37
    %vm311 = vcmp.lt.s32.totalorder %v295, 37
    %vm312 = vcmp.lt.s32.totalorder %v296, 37
    %vm313 = vcmp.lt.s32.totalorder %v297, 37
    %vm314 = vcmp.lt.s32.totalorder %v298, 37
    %vm315 = vcmp.lt.s32.totalorder %v299, 37
    %vm316 = vcmp.lt.s32.totalorder %v300, 37
    %vm317 = vcmp.lt.s32.totalorder %v301, 37
    %vm318 = vcmp.lt.s32.totalorder %v302, 37
    %vm319 = vcmp.lt.s32.totalorder %v303, 37
    %vm320 = vcmp.lt.s32.totalorder %v304, 37
    %vm321 = vcmp.lt.s32.totalorder %v305, 37
    %vm322 = vcmp.lt.s32.totalorder %v306, 37
    %vm323 = vcmp.lt.s32.totalorder %v307, 37
    %v324 = vsel %vm308, 1, 0
    %v325 = vsel %vm309, 1, 0
    %v326 = vsel %vm310, 1, 0
    %v327 = vsel %vm311, 1, 0
    %v328 = vsel %vm312, 1, 0
    %v329 = vsel %vm313, 1, 0
    %v330 = vsel %vm314, 1, 0
    %v331 = vsel %vm315, 1, 0
    %v332 = vsel %vm316, 1, 0
    %v333 = vsel %vm317, 1, 0
    %v334 = vsel %vm318, 1, 0
    %v335 = vsel %vm319, 1, 0
    %v336 = vsel %vm320, 1, 0
    %v337 = vsel %vm321, 1, 0
    %v338 = vsel %vm322, 1, 0
    %v339 = vsel %vm323, 1, 0
    %vm340 = vcmp.eq.s32.totalorder %v324, 1
    %vm341 = vcmp.eq.s32.totalorder %v325, 1
    %vm342 = vcmp.eq.s32.totalorder %v326, 1
    %vm343 = vcmp.eq.s32.totalorder %v327, 1
    %vm344 = vcmp.eq.s32.totalorder %v328, 1
    %vm345 = vcmp.eq.s32.totalorder %v329, 1
    %vm346 = vcmp.eq.s32.totalorder %v330, 1
    %vm347 = vcmp.eq.s32.totalorder %v331, 1
    %vm348 = vcmp.eq.s32.totalorder %v332, 1
    %vm349 = vcmp.eq.s32.totalorder %v333, 1
    %vm350 = vcmp.eq.s32.totalorder %v334, 1
    %vm351 = vcmp.eq.s32.totalorder %v335, 1
    %vm352 = vcmp.eq.s32.totalorder %v336, 1
    %vm353 = vcmp.eq.s32.totalorder %v337, 1
    %vm354 = vcmp.eq.s32.totalorder %v338, 1
    %vm355 = vcmp.eq.s32.totalorder %v339, 1
    %v356 = vsel %vm340, %v256, 0.0
    %v357 = vsel %vm341, %v257, 0.0
    %v358 = vsel %vm342, %v258, 0.0
    %v359 = vsel %vm343, %v259, 0.0
    %v360 = vsel %vm344, %v260, 0.0
    %v361 = vsel %vm345, %v261, 0.0
    %v362 = vsel %vm346, %v262, 0.0
    %v363 = vsel %vm347, %v263, 0.0
    %v364 = vsel %vm348, %v264, 0.0
    %v365 = vsel %vm349, %v265, 0.0
    %v366 = vsel %vm350, %v266, 0.0
    %v367 = vsel %vm351, %v267, 0.0
    %v368 = vsel %vm352, %v268, 0.0
    %v369 = vsel %vm353, %v269, 0.0
    %v370 = vsel %vm354, %v270, 0.0
    %v371 = vsel %vm355, %v271, 0.0
    %v372 = vld [vmem:[#allocation2] sm:$0xff]
    %vm373 = vcmask 523264
    %v374 = vsel %vm373, %v356, 0.0
    %v375 = vsel %vm373, %v357, 0.0
    %v376 = vadd.f32 %v374, %v375
    %v377 = vsel %vm373, %v358, 0.0
    %v378 = vadd.f32 %v376, %v377
    %v379 = vsel %vm373, %v359, 0.0
    %v380 = vadd.f32 %v378, %v379
    %v381 = vsel %vm373, %v360, 0.0
    %v382 = vadd.f32 %v380, %v381
    %v383 = vsel %vm373, %v361, 0.0
    %v384 = vadd.f32 %v382, %v383
    %v385 = vsel %vm373, %v362, 0.0
    %v386 = vadd.f32 %v384, %v385
    %v387 = vsel %vm373, %v363, 0.0
    %v388 = vadd.f32 %v386, %v387
    %v389 = vsel %vm373, %v364, 0.0
    %v390 = vadd.f32 %v388, %v389
    %v391 = vsel %vm373, %v365, 0.0
    %v392 = vadd.f32 %v390, %v391
    %v393 = vsel %vm373, %v366, 0.0
    %v394 = vadd.f32 %v392, %v393
    %v395 = vsel %vm373, %v367, 0.0
    %v396 = vadd.f32 %v394, %v395
    %v397 = vsel %vm373, %v368, 0.0
    %v398 = vadd.f32 %v396, %v397
    %v399 = vsel %vm373, %v369, 0.0
    %v400 = vadd.f32 %v398, %v399
    %v401 = vsel %vm373, %v370, 0.0
    %v402 = vadd.f32 %v400, %v401
    %v403 = vsel %vm373, %v371, 0.0
    %v404 = vadd.f32 %v402, %v403
    %v405 = vadd.f32 %v372, %v404
    %406 = vst.msk [vmem:[#allocation2] sm:$0xff] %vm373, %v405
    // Predicated region
    $region18: #{tpu_custom_call.1} parent=1 // pred_check
      _
    $region19: #{tpu_custom_call.1} parent=1 // pred_check_branch
      %408 = sbr.rel (0) target = $region21
    $region20: #{tpu_custom_call.1} parent=1 // pred_region
      %s410 = ssub.s32 128, 128
      %411 = vsyncadd [#allocation3], %s410
      %s413 = sshll.u32 [#allocation2], 4
      %s414 = int_to_ptr.vmem [resolvable:$true] %s413
      %416 = dma.vmem_to_hbm [thread:$0]  %s414, 128, %s3, [#allocation3]
    $region21: #{tpu_custom_call.1} parent=1 // pred_fallthru
      _
    // Predicated region
    $region22: #{tpu_custom_call.1} parent=1 // pred_check
      _
    $region23: #{tpu_custom_call.1} parent=1 // pred_check_branch
      %418 = sbr.rel (0) target = $region25
    $region24: #{tpu_custom_call.1} parent=1 // pred_region
      %419 = dma.done [#allocation3], 128
    $region25: #{tpu_custom_call.1} parent=1 // pred_fallthru
      _
    %420 = vsyncpa [#allocation3], 1

</llo_original>
